<compile_context>
chip_gen: v6e
topology: v6e:2x2x1
jax: 0.10.0
libtpu: 0.0.40
codegen_flags: <defaults>
</compile_context>

<pallas_src>
import jax
import jax.numpy as jnp
from jax.experimental import pallas as pl
from jax.experimental.pallas import tpu as pltpu


def _round_up(x: int, m: int) -> int:
    return ((x + m - 1) // m) * m


def _cdiv(a: int, b: int) -> int:
    return -(-a // b)


# ----------------------------------------------------------------------------
# Kernel
# ----------------------------------------------------------------------------
def gru_ode_kernel(h_ref, diff_ref,
                   w_rz_ref, b_rz_ref,
                   w_hh_ref, b_hh_ref,
                   dh_ref):
    h_nat = h_ref[...]                         # [Bt, Hp] io dtype (bf16 or f32)
    h = h_nat.astype(jnp.float32)
    diff = diff_ref[...].astype(jnp.float32)
    hp = h.shape[1]

    # Fused r/z gates: one MXU pass against the concatenated (Hp, 2*Hp) weight.
    rz = jax.nn.sigmoid(
        jnp.dot(h_nat.astype(w_rz_ref.dtype), w_rz_ref[...],
                preferred_element_type=jnp.float32)
        + b_rz_ref[...]
    )
    r = rz[:, :hp]
    z = rz[:, hp:]

    # u = tanh(lin_hh(r * h)); elementwise math stays f32, matmul in w dtype.
    u = jnp.tanh(
        jnp.dot((r * h).astype(w_hh_ref.dtype), w_hh_ref[...],
                preferred_element_type=jnp.float32)
        + b_hh_ref[...]
    )

    dh_ref[...] = ((1.0 - z) * (u - h) * diff).astype(dh_ref.dtype)


# ----------------------------------------------------------------------------
# Weight prep (hoist out of the per-drift-eval path)
# ----------------------------------------------------------------------------
def prepare_gru_ode_params(params, weight_dtype=jnp.bfloat16):
    """Hoistable (once-per-trajectory) weight prep.

    Transposes PyTorch (out, in) weights -> (in, out), zero-pads the hidden
    dim to a multiple of 128 lanes, fuses the r/z gate weights, and casts
    weights to `weight_dtype` (default bf16 -- the MXU is bf16-native on
    v5e/v6e/v7x; pass jnp.float32 only if tight f32 accuracy is required).
    Biases stay f32 (they add to the f32 accumulator).
    """
    H = params["w_hh"].shape[0]
    Hp = _round_up(H, 128)
    pad = Hp - H

    def prep_w(w):  # (out, in) -> zero-padded (Hp, Hp) in (in, out) layout
        return jnp.pad(w.T, ((0, pad), (0, pad))).astype(weight_dtype)

    def prep_b(b):  # (H,) -> zero-padded (1, Hp), f32
        return jnp.pad(b, (0, pad)).astype(jnp.float32).reshape(1, Hp)

    w_rz = jnp.concatenate([prep_w(params["w_hr"]), prep_w(params["w_hz"])],
                           axis=1)                         # (Hp, 2*Hp)
    b_rz = jnp.concatenate([prep_b(params["b_hr"]), prep_b(params["b_hz"])],
                           axis=1)                         # (1, 2*Hp)
    w_hh = prep_w(params["w_hh"])                          # (Hp, Hp)
    b_hh = prep_b(params["b_hh"])                          # (1, Hp)
    return {"w_rz": w_rz, "b_rz": b_rz, "w_hh": w_hh, "b_hh": b_hh}


# ----------------------------------------------------------------------------
# VMEM / tiling heuristics (generation-aware)
# ----------------------------------------------------------------------------
def _vmem_info():
    """Returns (vmem_ceiling_bytes, small_vmem_chip)."""
    try:
        cap = int(pltpu.get_tpu_info().vmem_capacity_bytes)
    except Exception:
        cap = 128 * 1024 * 1024
    if cap <= 64 * 1024 * 1024:
        # v7x-class: 64 MiB physical per TC; leave headroom for Mosaic scratch.
        return 56 * 1024 * 1024, True
    # v5e / v6e: 128 MiB physical; explicit limit overrides the scoped default.
    return 112 * 1024 * 1024, False


def _choose_batch_tiling(B, Hp, io_itemsize, w_bytes, vmem_ceiling,
                         small_vmem, mult, b_tile):
    if b_tile is None:
        b_tile = 256 if small_vmem else 512
    # Shrink the tile if the per-row VMEM cost (pipelined io + f32 temps)
    # does not fit next to the resident weights.
    per_row = Hp * (3 * io_itemsize * 2 + 6 * 4)
    avail = vmem_ceiling - w_bytes - (2 << 20)
    if avail > 0:
        fit = (avail // per_row) // mult * mult
        b_tile = max(mult, min(b_tile, fit if fit > 0 else mult))
    else:
        b_tile = mult  # VMEM-starved; see TODO on column streaming.

    n_tiles = max(1, _cdiv(B, b_tile))
    # On 2-TensorCore chips make sure the "parallel" axis has >=2 steps.
    if small_vmem and n_tiles == 1 and B >= 2 * mult:
        n_tiles = 2
    Bt = _round_up(_cdiv(B, n_tiles), mult)   # even tiling, minimal padding
    Bp = Bt * n_tiles
    return Bt, Bp, n_tiles


# ----------------------------------------------------------------------------
# Drift evaluation
# ----------------------------------------------------------------------------
def gru_ode_apply(t, inp, prepped, *, b_tile=None, io_dtype=None):
    """Drift evaluation with pre-prepared weights (use inside solver loops)."""
    del t  # GRU-ODE drift does not depend on t
    h, diff = inp
    B, H = h.shape
    w_rz, b_rz = prepped["w_rz"], prepped["b_rz"]
    w_hh, b_hh = prepped["w_hh"], prepped["b_hh"]
    Hp = w_hh.shape[0]

    w_dtype = w_hh.dtype
    if io_dtype is None:
        # Keep h/diff/dh bf16 across HBM when the weights are bf16 (halves the
        # pipelined DMA); the kernel casts to f32 for the gate math.
        io_dtype = jnp.bfloat16 if w_dtype == jnp.bfloat16 else jnp.float32
    io_itemsize = jnp.dtype(io_dtype).itemsize
    w_itemsize = jnp.dtype(w_dtype).itemsize
    mult = 16 if io_itemsize == 2 else 8      # sublane packing of io dtype

    # Weights/biases are single-buffered (constant index_map) -> 1x their size.
    w_bytes = (w_rz.size + w_hh.size) * w_itemsize + (b_rz.size + b_hh.size) * 4

    vmem_ceiling, small_vmem = _vmem_info()
    Bt, Bp, _ = _choose_batch_tiling(B, Hp, io_itemsize, w_bytes, vmem_ceiling,
                                     small_vmem, mult, b_tile)
    grid = (Bp // Bt,)

    if (Bp, Hp) != (B, H):
        h_p = jnp.pad(h, ((0, Bp - B), (0, Hp - H))).astype(io_dtype)
        diff_p = jnp.pad(diff, ((0, Bp - B), (0, Hp - H))).astype(io_dtype)
    else:
        h_p = h.astype(io_dtype)
        diff_p = diff.astype(io_dtype)

    # VMEM budget: resident weights (1x) + pipelined io (2-deep) + f32 temps
    # (rz [Bt,2Hp], r*h, u, dh ~ 6*Bt*Hp f32) + Mosaic internal slack.
    io_bytes = 3 * Bt * Hp * io_itemsize * 2
    interm_bytes = 6 * Bt * Hp * 4
    vmem_limit = int(min(vmem_ceiling,
                         max(24 << 20,
                             w_bytes + io_bytes + interm_bytes + (2 << 20))))

    cost = pl.CostEstimate(
        flops=6 * Bp * Hp * Hp,                 # (Hp,2Hp) + (Hp,Hp) matmuls
        transcendentals=3 * Bp * Hp,            # sigmoid x2, tanh x1
        bytes_accessed=int(w_bytes + 3 * Bp * Hp * io_itemsize),
    )

    resident = pl.Buffered(1)                   # constant-index blocks: 1 buffer

    dh_p = pl.pallas_call(
        gru_ode_kernel,
        out_shape=jax.ShapeDtypeStruct((Bp, Hp), io_dtype),
        grid=grid,
        in_specs=[
            pl.BlockSpec((Bt, Hp), lambda i: (i, 0)),        # h     (pipelined)
            pl.BlockSpec((Bt, Hp), lambda i: (i, 0)),        # diff  (pipelined)
            pl.BlockSpec((Hp, 2 * Hp), lambda i: (0, 0),
                         pipeline_mode=resident),            # w_rz  (resident)
            pl.BlockSpec((1, 2 * Hp), lambda i: (0, 0),
                         pipeline_mode=resident),            # b_rz  (resident)
            pl.BlockSpec((Hp, Hp), lambda i: (0, 0),
                         pipeline_mode=resident),            # w_hh  (resident)
            pl.BlockSpec((1, Hp), lambda i: (0, 0),
                         pipeline_mode=resident),            # b_hh  (resident)
        ],
        out_specs=pl.BlockSpec((Bt, Hp), lambda i: (i, 0)),
        compiler_params=pltpu.CompilerParams(
            dimension_semantics=("parallel",),
            vmem_limit_bytes=vmem_limit,
        ),
        cost_estimate=cost,
    )(h_p, diff_p, w_rz, b_rz, w_hh, b_hh)

    dh = dh_p[:B, :H].astype(h.dtype)
    # ddiff is identically zero; never touch HBM for it inside the kernel.
    return dh, jnp.zeros_like(diff)


def gru_ode_net(t, inp, params, weight_dtype=jnp.bfloat16):
    """Pallas equivalent of GRUODENet.forward with raw PyTorch-style params.

    For solver loops, call prepare_gru_ode_params once and use gru_ode_apply
    so weight transpose/concat/pad/cast is not re-emitted per drift eval.
    """
    prepped = prepare_gru_ode_params(params, weight_dtype=weight_dtype)
    return gru_ode_apply(t, inp, prepped)


def gru_ode_ref(t, inp, params):
    """Pure-JAX reference matching the PyTorch forward."""
    del t
    h, diff = inp
    lin = lambda x, w, b: x @ w.T + b
    r = jax.nn.sigmoid(lin(h, params["w_hr"], params["b_hr"]))
    z = jax.nn.sigmoid(lin(h, params["w_hz"], params["b_hz"]))
    u = jnp.tanh(lin(r * h, params["w_hh"], params["b_hh"]))
    dh = (1.0 - z) * (u - h) * diff
    return dh, jnp.zeros_like(diff)


if __name__ == "__main__":
    hidden_dim = 32
    batch = 8

    key = jax.random.PRNGKey(0)
    keys = jax.random.split(key, 8)

    # Deterministic synthetic parameters (PyTorch nn.Linear shapes).
    bound = 1.0 / jnp.sqrt(hidden_dim)
    params = {
        "w_hh": jax.random.uniform(keys[0], (hidden_dim, hidden_dim),
                                   jnp.float32, -bound, bound),
        "b_hh": jax.random.uniform(keys[1], (hidden_dim,),
                                   jnp.float32, -bound, bound),
        "w_hz": jax.random.uniform(keys[2], (hidden_dim, hidden_dim),
                                   jnp.float32, -bound, bound),
        "b_hz": jax.random.uniform(keys[3], (hidden_dim,),
                                   jnp.float32, -bound, bound),
        "w_hr": jax.random.uniform(keys[4], (hidden_dim, hidden_dim),
                                   jnp.float32, -bound, bound),
        "b_hr": jax.random.uniform(keys[5], (hidden_dim,),
                                   jnp.float32, -bound, bound),
    }

    h = jax.random.normal(keys[6], (batch, hidden_dim), jnp.float32)
    diff = jax.random.normal(keys[7], (batch, hidden_dim), jnp.float32)
    t = jnp.float32(0.0)

    dh_ref, ddiff_ref = gru_ode_ref(t, (h, diff), params)

    # 1) f32 weights + f32 io: tight numerical check against the reference.
    prepped_f32 = prepare_gru_ode_params(params, weight_dtype=jnp.float32)
    dh32, dd32 = gru_ode_apply(t, (h, diff), prepped_f32)
    dh32 = jax.block_until_ready(dh32)
    dd32 = jax.block_until_ready(dd32)
    assert dh32.shape == (batch, hidden_dim) and dd32.shape == (batch, hidden_dim)
    assert jnp.allclose(dh32, dh_ref, atol=1e-5, rtol=1e-5)
    assert jnp.all(dd32 == 0.0)

    # 2) Default (bf16 weights + bf16 io): performance configuration; looser
    #    tolerance reflects expected bf16 quantization, not a kernel bug.
    prepped_bf16 = prepare_gru_ode_params(params)
    dh16, dd16 = gru_ode_apply(t, (h, diff), prepped_bf16)
    dh16 = jax.block_until_ready(dh16)
    dd16 = jax.block_until_ready(dd16)
    assert dh16.shape == (batch, hidden_dim) and dd16.shape == (batch, hidden_dim)
    assert jnp.allclose(dh16, dh_ref, atol=3e-2, rtol=3e-2)
    assert jnp.all(dd16 == 0.0)

    print("KERNEL_OK")
</pallas_src>

<mosaic_0001>
module attributes {stable_mosaic.version = 11 : i64} {
  func.func @gru_ode_kernel(%arg0: i32, %arg1: memref<8x128xf32, #tpu.memory_space<vmem>>, %arg2: memref<8x128xf32, #tpu.memory_space<vmem>>, %arg3: memref<128x256xf32, #tpu.memory_space<vmem>>, %arg4: memref<1x256xf32, #tpu.memory_space<vmem>>, %arg5: memref<128x128xf32, #tpu.memory_space<vmem>>, %arg6: memref<1x128xf32, #tpu.memory_space<vmem>>, %arg7: memref<8x128xf32, #tpu.memory_space<vmem>>) attributes {dimension_semantics = [#tpu.dimension_semantics<parallel>], iteration_bounds = array<i64: 1>, scalar_prefetch = 0 : i64, scratch_operands = 0 : i64, tpu.core_type = #tpu.core_type<tc>, window_params = [{transform_indices = @transform_0, window_bounds = array<i64: 8, 128>}, {transform_indices = @transform_1, window_bounds = array<i64: 8, 128>}, {pipeline_mode = #tpu.pipeline_mode<synchronous>, transform_indices = @transform_2, window_bounds = array<i64: 128, 256>}, {pipeline_mode = #tpu.pipeline_mode<synchronous>, transform_indices = @transform_3, window_bounds = array<i64: 1, 256>}, {pipeline_mode = #tpu.pipeline_mode<synchronous>, transform_indices = @transform_4, window_bounds = array<i64: 128, 128>}, {pipeline_mode = #tpu.pipeline_mode<synchronous>, transform_indices = @transform_5, window_bounds = array<i64: 1, 128>}, {transform_indices = @transform_6, window_bounds = array<i64: 8, 128>}]} {
    %c0 = arith.constant 0 : index
    %c0_0 = arith.constant 0 : index
    %0 = vector.load %arg1[%c0, %c0_0] : memref<8x128xf32, #tpu.memory_space<vmem>>, vector<8x128xf32>
    %c0_1 = arith.constant 0 : index
    %c0_2 = arith.constant 0 : index
    %1 = vector.load %arg2[%c0_1, %c0_2] : memref<8x128xf32, #tpu.memory_space<vmem>>, vector<8x128xf32>
    %c0_3 = arith.constant 0 : index
    %c0_4 = arith.constant 0 : index
    %2 = vector.load %arg3[%c0_3, %c0_4] : memref<128x256xf32, #tpu.memory_space<vmem>>, vector<128x256xf32>
    %cst = arith.constant dense<0.000000e+00> : vector<8x256xf32>
    %3 = tpu.matmul %0, %2, %cst {dimension_numbers = #tpu.dot_dimension_numbers<[1], [0], [0], [1], [0, 0, 1, 1], [], []>} : vector<8x128xf32>, vector<128x256xf32>, vector<8x256xf32> -> vector<8x256xf32>
    %c0_5 = arith.constant 0 : index
    %c0_6 = arith.constant 0 : index
    %4 = vector.load %arg4[%c0_5, %c0_6] : memref<1x256xf32, #tpu.memory_space<vmem>>, vector<1x256xf32>
    %5 = vector.broadcast %4 : vector<1x256xf32> to vector<8x256xf32>
    %6 = arith.addf %3, %5 : vector<8x256xf32>
    %7 = arith.negf %6 : vector<8x256xf32>
    %8 = math.exp %7 : vector<8x256xf32>
    %cst_7 = arith.constant 1.000000e+00 : f32
    %9 = vector.broadcast %cst_7 : f32 to vector<8x256xf32>
    %10 = arith.addf %9, %8 : vector<8x256xf32>
    %11 = arith.divf %9, %10 : vector<8x256xf32>
    %12 = vector.extract_strided_slice %11 {offsets = [0, 0], sizes = [8, 128], strides = [1, 1]} : vector<8x256xf32> to vector<8x128xf32>
    %13 = vector.extract_strided_slice %11 {offsets = [0, 128], sizes = [8, 128], strides = [1, 1]} : vector<8x256xf32> to vector<8x128xf32>
    %14 = arith.mulf %12, %0 : vector<8x128xf32>
    %c0_8 = arith.constant 0 : index
    %c0_9 = arith.constant 0 : index
    %15 = vector.load %arg5[%c0_8, %c0_9] : memref<128x128xf32, #tpu.memory_space<vmem>>, vector<128x128xf32>
    %cst_10 = arith.constant dense<0.000000e+00> : vector<8x128xf32>
    %16 = tpu.matmul %14, %15, %cst_10 {dimension_numbers = #tpu.dot_dimension_numbers<[1], [0], [0], [1], [0, 0, 1, 1], [], []>} : vector<8x128xf32>, vector<128x128xf32>, vector<8x128xf32> -> vector<8x128xf32>
    %c0_11 = arith.constant 0 : index
    %c0_12 = arith.constant 0 : index
    %17 = vector.load %arg6[%c0_11, %c0_12] : memref<1x128xf32, #tpu.memory_space<vmem>>, vector<1x128xf32>
    %18 = vector.broadcast %17 : vector<1x128xf32> to vector<8x128xf32>
    %19 = arith.addf %16, %18 : vector<8x128xf32>
    %20 = math.tanh %19 : vector<8x128xf32>
    %cst_13 = arith.constant 1.000000e+00 : f32
    %21 = vector.broadcast %cst_13 : f32 to vector<8x128xf32>
    %22 = arith.subf %21, %13 : vector<8x128xf32>
    %23 = arith.subf %20, %0 : vector<8x128xf32>
    %24 = arith.mulf %22, %23 : vector<8x128xf32>
    %25 = arith.mulf %24, %1 : vector<8x128xf32>
    %c0_14 = arith.constant 0 : index
    %c0_15 = arith.constant 0 : index
    %26 = vector.load %arg7[%c0_14, %c0_15] : memref<8x128xf32, #tpu.memory_space<vmem>>, vector<8x128xf32>
    tpu.vector_store %arg7[%c0_14, %c0_15], %25 {strides = array<i32>} : memref<8x128xf32, #tpu.memory_space<vmem>>, vector<8x128xf32>,
    return
  }
  func.func @transform_0(%arg0: i32) -> (i32, i32) {
    %c0_i32 = arith.constant 0 : i32
    %c0_i32_0 = arith.constant 0 : i32
    return %arg0, %c0_i32 : i32, i32
  }
  func.func @transform_1(%arg0: i32) -> (i32, i32) {
    %c0_i32 = arith.constant 0 : i32
    %c0_i32_0 = arith.constant 0 : i32
    return %arg0, %c0_i32 : i32, i32
  }
  func.func @transform_2(%arg0: i32) -> (i32, i32) {
    %c0_i32 = arith.constant 0 : i32
    %c0_i32_0 = arith.constant 0 : i32
    %c0_i32_1 = arith.constant 0 : i32
    return %c0_i32, %c0_i32_0 : i32, i32
  }
  func.func @transform_3(%arg0: i32) -> (i32, i32) {
    %c0_i32 = arith.constant 0 : i32
    %c0_i32_0 = arith.constant 0 : i32
    %c0_i32_1 = arith.constant 0 : i32
    return %c0_i32, %c0_i32_0 : i32, i32
  }
  func.func @transform_4(%arg0: i32) -> (i32, i32) {
    %c0_i32 = arith.constant 0 : i32
    %c0_i32_0 = arith.constant 0 : i32
    %c0_i32_1 = arith.constant 0 : i32
    return %c0_i32, %c0_i32_0 : i32, i32
  }
  func.func @transform_5(%arg0: i32) -> (i32, i32) {
    %c0_i32 = arith.constant 0 : i32
    %c0_i32_0 = arith.constant 0 : i32
    %c0_i32_1 = arith.constant 0 : i32
    return %c0_i32, %c0_i32_0 : i32, i32
  }
  func.func @transform_6(%arg0: i32) -> (i32, i32) {
    %c0_i32 = arith.constant 0 : i32
    %c0_i32_0 = arith.constant 0 : i32
    return %arg0, %c0_i32 : i32, i32
  }
}

</mosaic_0001>

<llo_original>
// kernel: tpu_custom_call.1
$region0: #{tpu_custom_call.1}
  #allocation0 [shape = 'u32[]', space=smem, size = 0x4, offset = 0x4, fixed_abs, tag = 'smem constant byte address 0x4 - core index']
  #allocation1 [shape = 'u32[144,128]{1,0:T(1,128)}', space=vmem, size = 0x12000, scoped, tag = 'internal scratch']
  %s0 = inlined_call_operand.hbm [shape: f32[8,128], index: 0, kind: input, shape index: {}]
  %s1 = inlined_call_operand.hbm [shape: f32[8,128], index: 1, kind: input, shape index: {}]
  %s2 = inlined_call_operand.hbm [shape: f32[128,256], index: 2, kind: input, shape index: {}]
  %s3 = inlined_call_operand.vmem [shape: f32[1,256], index: 3, kind: input, shape index: {}]
  %s4 = inlined_call_operand.hbm [shape: f32[128,128], index: 4, kind: input, shape index: {}]
  %s5 = inlined_call_operand.vmem [shape: f32[1,128], index: 5, kind: input, shape index: {}]
  %s6 = inlined_call_operand.hbm [shape: f32[8,128], index: 6, kind: output, shape index: {}]
  %s7 = sld [smem:[#allocation0]]
  $region50: #{tpu_custom_call.1} parent=0
    _
  %s9 = ssub.s32 1, %s7
  %s10 = scalar_select 0, %s9, %s7
  $region1: #{tpu_custom_call.1} parent=0
    #allocation2 [shape = 'u8[4096]{0}', space=vmem, size = 0x1000, scoped, tag = 'input window, operand 0, single buffered']
    #allocation3 [shape = 's32[1]{0}', space=sflag, size = 0x4, scoped, tag = 'scoped memory for tpu_custom_call.1']
    #allocation4 [shape = 's32[1]{0}', space=sflag, size = 0x4, scoped, tag = 'scoped memory for tpu_custom_call.1']
    #allocation5 [shape = 'u8[4096]{0}', space=vmem, size = 0x1000, scoped, tag = 'input window, operand 1, single buffered']
    #allocation6 [shape = 's32[1]{0}', space=sflag, size = 0x4, scoped, tag = 'scoped memory for tpu_custom_call.1']
    #allocation7 [shape = 'u8[131072]{0}', space=vmem, size = 0x20000, scoped, tag = 'input window, operand 2, single buffered']
    #allocation8 [shape = 'u8[65536]{0}', space=vmem, size = 0x10000, scoped, tag = 'input window, operand 4, single buffered']
    #allocation9 [shape = 's32[1]{0}', space=sflag, size = 0x4, scoped, tag = 'scoped memory for tpu_custom_call.1']
    #allocation10 [shape = 'u8[4096]{0}', space=vmem, size = 0x1000, scoped, tag = 'output window, operand 0, single buffered']
    %11 = vsyncpa [#allocation3], 0
    %12 = vsyncpa [#allocation6], 0
    %13 = vsyncpa [#allocation9], 0
    %14 = vsyncpa [#allocation4], 0
    // Predicated region
    $region2: #{tpu_custom_call.1} parent=1 // pred_check
      _
    $region3: #{tpu_custom_call.1} parent=1 // pred_check_branch
      %16 = sbr.rel (0) target = $region5
    $region4: #{tpu_custom_call.1} parent=1 // pred_region
      %s18 = ssub.s32 128, 128
      %19 = vsyncadd [#allocation3], %s18
      %s21 = sshll.u32 [#allocation2], 4
      %s22 = int_to_ptr.vmem [resolvable:$true] %s21
      %24 = dma.hbm_to_vmem [thread:$0]  %s0, 128, %s22, [#allocation3]
    $region5: #{tpu_custom_call.1} parent=1 // pred_fallthru
      _
    // Predicated region
    $region6: #{tpu_custom_call.1} parent=1 // pred_check
      _
    $region7: #{tpu_custom_call.1} parent=1 // pred_check_branch
      %26 = sbr.rel (0) target = $region9
    $region8: #{tpu_custom_call.1} parent=1 // pred_region
      %s28 = ssub.s32 128, 128
      %29 = vsyncadd [#allocation6], %s28
      %s31 = sshll.u32 [#allocation5], 4
      %s32 = int_to_ptr.vmem [resolvable:$true] %s31
      %34 = dma.hbm_to_vmem [thread:$0]  %s1, 128, %s32, [#allocation6]
    $region9: #{tpu_custom_call.1} parent=1 // pred_fallthru
      _
    // Predicated region
    $region10: #{tpu_custom_call.1} parent=1 // pred_check
      _
    $region11: #{tpu_custom_call.1} parent=1 // pred_check_branch
      %36 = sbr.rel (0) target = $region13
    $region12: #{tpu_custom_call.1} parent=1 // pred_region
      %s38 = ssub.s32 4096, 4096
      %39 = vsyncadd [#allocation6], %s38
      %s40 = sshll.u32 [#allocation7], 4
      %s41 = int_to_ptr.vmem [resolvable:$true] %s40
      %46 = dma.hbm_to_vmem [thread:$0]  %s2, 4096, %s41, [#allocation6], 256, 256, 16
    $region13: #{tpu_custom_call.1} parent=1 // pred_fallthru
      _
    // Predicated region
    $region14: #{tpu_custom_call.1} parent=1 // pred_check
      _
    $region15: #{tpu_custom_call.1} parent=1 // pred_check_branch
      %48 = sbr.rel (0) target = $region17
    $region16: #{tpu_custom_call.1} parent=1 // pred_region
      _
    $region17: #{tpu_custom_call.1} parent=1 // pred_fallthru
      _
    // Predicated region
    $region18: #{tpu_custom_call.1} parent=1 // pred_check
      _
    $region19: #{tpu_custom_call.1} parent=1 // pred_check_branch
      %50 = sbr.rel (0) target = $region21
    $region20: #{tpu_custom_call.1} parent=1 // pred_region
      %s52 = ssub.s32 2048, 2048
      %53 = vsyncadd [#allocation9], %s52
      %s54 = sshll.u32 [#allocation8], 4
      %s55 = int_to_ptr.vmem [resolvable:$true] %s54
      %60 = dma.hbm_to_vmem [thread:$0]  %s4, 2048, %s55, [#allocation9], 128, 128, 8
    $region21: #{tpu_custom_call.1} parent=1 // pred_fallthru
      _
    // Predicated region
    $region22: #{tpu_custom_call.1} parent=1 // pred_check
      _
    $region23: #{tpu_custom_call.1} parent=1 // pred_check_branch
      %62 = sbr.rel (0) target = $region25
    $region24: #{tpu_custom_call.1} parent=1 // pred_region
      _
    $region25: #{tpu_custom_call.1} parent=1 // pred_fallthru
      _
    // Predicated region
    $region26: #{tpu_custom_call.1} parent=1 // pred_check
      _
    $region27: #{tpu_custom_call.1} parent=1 // pred_check_branch
      %64 = sbr.rel (0) target = $region29
    $region28: #{tpu_custom_call.1} parent=1 // pred_region
      %65 = dma.done [#allocation3], 128
    $region29: #{tpu_custom_call.1} parent=1 // pred_fallthru
      _
    // Predicated region
    $region30: #{tpu_custom_call.1} parent=1 // pred_check
      _
    $region31: #{tpu_custom_call.1} parent=1 // pred_check_branch
      %67 = sbr.rel (0) target = $region33
    $region32: #{tpu_custom_call.1} parent=1 // pred_region
      %68 = dma.done [#allocation6], 128
    $region33: #{tpu_custom_call.1} parent=1 // pred_fallthru
      _
    // Predicated region
    $region34: #{tpu_custom_call.1} parent=1 // pred_check
      _
    $region35: #{tpu_custom_call.1} parent=1 // pred_check_branch
      %70 = sbr.rel (0) target = $region37
    $region36: #{tpu_custom_call.1} parent=1 // pred_region
      %71 = dma.done [#allocation6], 4096
    $region37: #{tpu_custom_call.1} parent=1 // pred_fallthru
      _
    // Predicated region
    $region38: #{tpu_custom_call.1} parent=1 // pred_check
      _
    $region39: #{tpu_custom_call.1} parent=1 // pred_check_branch
      %73 = sbr.rel (0) target = $region41
    $region40: #{tpu_custom_call.1} parent=1 // pred_region
      %74 = dma.done [#allocation9], 2048
    $region41: #{tpu_custom_call.1} parent=1 // pred_fallthru
      _
    %v75 = vld [vmem:[#allocation2] sm:$0xff]
    %v76 = vld [vmem:[#allocation5] sm:$0xff]
    %v77 = vld [vmem:[#allocation7] sm:$0xff]
    %v78 = vld [vmem:[#allocation7 + $0x8] sm:$0xff]
    %v79 = vld [vmem:[#allocation7 + $0x10] sm:$0xff]
    %v80 = vld [vmem:[#allocation7 + $0x18] sm:$0xff]
    %v81 = vld [vmem:[#allocation7 + $0x20] sm:$0xff]
    %v82 = vld [vmem:[#allocation7 + $0x28] sm:$0xff]
    %v83 = vld [vmem:[#allocation7 + $0x30] sm:$0xff]
    %v84 = vld [vmem:[#allocation7 + $0x38] sm:$0xff]
    %v85 = vld [vmem:[#allocation7 + $0x40] sm:$0xff]
    %v86 = vld [vmem:[#allocation7 + $0x48] sm:$0xff]
    %v87 = vld [vmem:[#allocation7 + $0x50] sm:$0xff]
    %v88 = vld [vmem:[#allocation7 + $0x58] sm:$0xff]
    %v89 = vld [vmem:[#allocation7 + $0x60] sm:$0xff]
    %v90 = vld [vmem:[#allocation7 + $0x68] sm:$0xff]
    %v91 = vld [vmem:[#allocation7 + $0x70] sm:$0xff]
    %v92 = vld [vmem:[#allocation7 + $0x78] sm:$0xff]
    %v93 = vld [vmem:[#allocation7 + $0x80] sm:$0xff]
    %v94 = vld [vmem:[#allocation7 + $0x88] sm:$0xff]
    %v95 = vld [vmem:[#allocation7 + $0x90] sm:$0xff]
    %v96 = vld [vmem:[#allocation7 + $0x98] sm:$0xff]
    %v97 = vld [vmem:[#allocation7 + $0xa0] sm:$0xff]
    %v98 = vld [vmem:[#allocation7 + $0xa8] sm:$0xff]
    %v99 = vld [vmem:[#allocation7 + $0xb0] sm:$0xff]
    %v100 = vld [vmem:[#allocation7 + $0xb8] sm:$0xff]
    %v101 = vld [vmem:[#allocation7 + $0xc0] sm:$0xff]
    %v102 = vld [vmem:[#allocation7 + $0xc8] sm:$0xff]
    %v103 = vld [vmem:[#allocation7 + $0xd0] sm:$0xff]
    %v104 = vld [vmem:[#allocation7 + $0xd8] sm:$0xff]
    %v105 = vld [vmem:[#allocation7 + $0xe0] sm:$0xff]
    %v106 = vld [vmem:[#allocation7 + $0xe8] sm:$0xff]
    %v107 = vld [vmem:[#allocation7 + $0xf0] sm:$0xff]
    %v108 = vld [vmem:[#allocation7 + $0xf8] sm:$0xff]
    %v109 = vld [vmem:[%s3] sm:$0x3]
    %v111 = vlaneseq
    %v112 = vshrl.u32 %v111, 7
    %v113 = vsub.s32 0, %v112
    %v114 = vrot.slane %v109, %v113
    %v115 = vlaneseq
    %v116 = vshrl.u32 %v115, 7
    %v117 = vsub.s32 1, %v116
    %v118 = vrot.slane %v109, %v117
    %121 = vmatprep.subr.mxu0 %v108
    %122 = vmatpush1.msra.mxu0 %v107
    %123 = vmatprep.subr.mxu0 %v106
    %124 = vmatpush1.msra.mxu0 %v105
    %125 = vmatprep.subr.mxu0 %v104
    %126 = vmatpush1.msra.mxu0 %v103
    %127 = vmatprep.subr.mxu0 %v102
    %128 = vmatpush1.msra.mxu0 %v101
    %129 = vmatprep.subr.mxu0 %v100
    %130 = vmatpush1.msra.mxu0 %v99
    %131 = vmatprep.subr.mxu0 %v98
    %132 = vmatpush1.msra.mxu0 %v97
    %133 = vmatprep.subr.mxu0 %v96
    %134 = vmatpush1.msra.mxu0 %v95
    %135 = vmatprep.subr.mxu0 %v94
    %136 = vmatpush1.msra.mxu0 %v93
    %137 = vmatprep.subr.mxu0 %v92
    %138 = vmatpush1.msra.mxu0 %v91
    %139 = vmatprep.subr.mxu0 %v90
    %140 = vmatpush1.msra.mxu0 %v89
    %141 = vmatprep.subr.mxu0 %v88
    %142 = vmatpush1.msra.mxu0 %v87
    %143 = vmatprep.subr.mxu0 %v86
    %144 = vmatpush1.msra.mxu0 %v85
    %145 = vmatprep.subr.mxu0 %v84
    %146 = vmatpush1.msra.mxu0 %v83
    %147 = vmatprep.subr.mxu0 %v82
    %148 = vmatpush1.msra.mxu0 %v81
    %149 = vmatprep.subr.mxu0 %v80
    %150 = vmatpush1.msra.mxu0 %v79
    %151 = vmatprep.subr.mxu0 %v78
    %152 = vmatpush1.msra.mxu0 %v77
    %153 = vmatprep.subr.mxu0 0.0
    %154 = vmatpush2.msra.mxu0 0.0
    %155 = vmatprep.subr.mxu0 0.0
    %156 = vmatpush2.msra.mxu0 0.0
    %157 = vmatprep.subr.mxu0 0.0
    %158 = vmatpush2.msra.mxu0 0.0
    %159 = vmatprep.subr.mxu0 0.0
    %160 = vmatpush2.msra.mxu0 0.0
    %161 = vmatprep.subr.mxu0 0.0
    %162 = vmatpush2.msra.mxu0 0.0
    %163 = vmatprep.subr.mxu0 0.0
    %164 = vmatpush2.msra.mxu0 0.0
    %165 = vmatprep.subr.mxu0 0.0
    %166 = vmatpush2.msra.mxu0 0.0
    %167 = vmatprep.subr.mxu0 0.0
    %168 = vmatpush2.msra.mxu0 0.0
    %169 = vmatprep.subr.mxu0 0.0
    %170 = vmatpush2.msra.mxu0 0.0
    %171 = vmatprep.subr.mxu0 0.0
    %172 = vmatpush2.msra.mxu0 0.0
    %173 = vmatprep.subr.mxu0 0.0
    %174 = vmatpush2.msra.mxu0 0.0
    %175 = vmatprep.subr.mxu0 0.0
    %176 = vmatpush2.msra.mxu0 0.0
    %177 = vmatprep.subr.mxu0 0.0
    %178 = vmatpush2.msra.mxu0 0.0
    %179 = vmatprep.subr.mxu0 0.0
    %180 = vmatpush2.msra.mxu0 0.0
    %181 = vmatprep.subr.mxu0 0.0
    %182 = vmatpush2.msra.mxu0 0.0
    %183 = vmatprep.subr.mxu0 0.0
    %184 = vmatpush2.msra.mxu0 0.0
    %185 = vmatprep.mubr.f32.mxu0 0.0
    %186 = vmatmul.mubr.f32.gmra.mxu0 %v75
    %v187 = vpop.f32.mrf.mxu0
    %v188 = vadd.f32 %v114, %v187
    %v189 = vpop.f32.mrf.mxu0
    %v190 = vadd.f32 %v118, %v189
    %191 = vdwg.mxu0
    %v192 = vxor.u32 %v188, 2147483648
    %v193 = vxor.u32 %v190, 2147483648
    %v194 = vmul.f32 %v192, 1.442695
    %v195 = vpow.pop %v194
    %v196 = vmul.f32 %v193, 1.442695
    %v197 = vpow.pop %v196
    %v198 = vadd.f32 %v195, 1.0
    %v199 = vadd.f32 %v197, 1.0
    %v200 = vrcp.pop %v198
    %v201 = vmul.f32 1.0, %v200
    %v202 = vrcp.pop %v199
    %v203 = vmul.f32 1.0, %v202
    %v204 = vmul.f32 %v201, %v75
    %v205 = vld [vmem:[#allocation8] sm:$0xff]
    %v206 = vld [vmem:[#allocation8 + $0x8] sm:$0xff]
    %v207 = vld [vmem:[#allocation8 + $0x10] sm:$0xff]
    %v208 = vld [vmem:[#allocation8 + $0x18] sm:$0xff]
    %v209 = vld [vmem:[#allocation8 + $0x20] sm:$0xff]
    %v210 = vld [vmem:[#allocation8 + $0x28] sm:$0xff]
    %v211 = vld [vmem:[#allocation8 + $0x30] sm:$0xff]
    %v212 = vld [vmem:[#allocation8 + $0x38] sm:$0xff]
    %v213 = vld [vmem:[#allocation8 + $0x40] sm:$0xff]
    %v214 = vld [vmem:[#allocation8 + $0x48] sm:$0xff]
    %v215 = vld [vmem:[#allocation8 + $0x50] sm:$0xff]
    %v216 = vld [vmem:[#allocation8 + $0x58] sm:$0xff]
    %v217 = vld [vmem:[#allocation8 + $0x60] sm:$0xff]
    %v218 = vld [vmem:[#allocation8 + $0x68] sm:$0xff]
    %v219 = vld [vmem:[#allocation8 + $0x70] sm:$0xff]
    %v220 = vld [vmem:[#allocation8 + $0x78] sm:$0xff]
    %v221 = vld [vmem:[%s5] sm:$0x1]
    %v223 = vlaneseq
    %v224 = vshrl.u32 %v223, 7
    %v225 = vsub.s32 0, %v224
    %v226 = vrot.slane %v221, %v225
    %228 = vmatprep.subr.mxu0 0.0
    %229 = vmatpush1.msra.mxu0 %v220
    %230 = vmatprep.subr.mxu0 0.0
    %231 = vmatpush1.msra.mxu0 %v219
    %232 = vmatprep.subr.mxu0 0.0
    %233 = vmatpush1.msra.mxu0 %v218
    %234 = vmatprep.subr.mxu0 0.0
    %235 = vmatpush1.msra.mxu0 %v217
    %236 = vmatprep.subr.mxu0 0.0
    %237 = vmatpush1.msra.mxu0 %v216
    %238 = vmatprep.subr.mxu0 0.0
    %239 = vmatpush1.msra.mxu0 %v215
    %240 = vmatprep.subr.mxu0 0.0
    %241 = vmatpush1.msra.mxu0 %v214
    %242 = vmatprep.subr.mxu0 0.0
    %243 = vmatpush1.msra.mxu0 %v213
    %244 = vmatprep.subr.mxu0 0.0
    %245 = vmatpush1.msra.mxu0 %v212
    %246 = vmatprep.subr.mxu0 0.0
    %247 = vmatpush1.msra.mxu0 %v211
    %248 = vmatprep.subr.mxu0 0.0
    %249 = vmatpush1.msra.mxu0 %v210
    %250 = vmatprep.subr.mxu0 0.0
    %251 = vmatpush1.msra.mxu0 %v209
    %252 = vmatprep.subr.mxu0 0.0
    %253 = vmatpush1.msra.mxu0 %v208
    %254 = vmatprep.subr.mxu0 0.0
    %255 = vmatpush1.msra.mxu0 %v207
    %256 = vmatprep.subr.mxu0 0.0
    %257 = vmatpush1.msra.mxu0 %v206
    %258 = vmatprep.subr.mxu0 0.0
    %259 = vmatpush1.msra.mxu0 %v205
    %260 = vmatprep.subr.mxu0 0.0
    %261 = vmatpush2.msra.mxu0 0.0
    %262 = vmatprep.subr.mxu0 0.0
    %263 = vmatpush2.msra.mxu0 0.0
    %264 = vmatprep.subr.mxu0 0.0
    %265 = vmatpush2.msra.mxu0 0.0
    %266 = vmatprep.subr.mxu0 0.0
    %267 = vmatpush2.msra.mxu0 0.0
    %268 = vmatprep.subr.mxu0 0.0
    %269 = vmatpush2.msra.mxu0 0.0
    %270 = vmatprep.subr.mxu0 0.0
    %271 = vmatpush2.msra.mxu0 0.0
    %272 = vmatprep.subr.mxu0 0.0
    %273 = vmatpush2.msra.mxu0 0.0
    %274 = vmatprep.subr.mxu0 0.0
    %275 = vmatpush2.msra.mxu0 0.0
    %276 = vmatprep.subr.mxu0 0.0
    %277 = vmatpush2.msra.mxu0 0.0
    %278 = vmatprep.subr.mxu0 0.0
    %279 = vmatpush2.msra.mxu0 0.0
    %280 = vmatprep.subr.mxu0 0.0
    %281 = vmatpush2.msra.mxu0 0.0
    %282 = vmatprep.subr.mxu0 0.0
    %283 = vmatpush2.msra.mxu0 0.0
    %284 = vmatprep.subr.mxu0 0.0
    %285 = vmatpush2.msra.mxu0 0.0
    %286 = vmatprep.subr.mxu0 0.0
    %287 = vmatpush2.msra.mxu0 0.0
    %288 = vmatprep.subr.mxu0 0.0
    %289 = vmatpush2.msra.mxu0 0.0
    %290 = vmatprep.subr.mxu0 0.0
    %291 = vmatpush2.msra.mxu0 0.0
    %292 = vmatprep.mubr.f32.mxu0 0.0
    %293 = vmatmul.mubr.f32.gmra.mxu0 %v204
    %v294 = vpop.f32.mrf.mxu0
    %v295 = vadd.f32 %v226, %v294
    %v296 = vpop.f32.mrf.mxu0
    %297 = vdwg.mxu0
    %v298 = vtanh.pop %v295
    %v299 = vsub.f32 1.0, %v203
    %v300 = vsub.f32 %v298, %v75
    %v301 = vmul.f32 %v299, %v300
    %v302 = vmul.f32 %v301, %v76
    %303 = vst [vmem:[#allocation10] sm:$0xff] %v302
    // Predicated region
    $region42: #{tpu_custom_call.1} parent=1 // pred_check
      _
    $region43: #{tpu_custom_call.1} parent=1 // pred_check_branch
      %305 = sbr.rel (0) target = $region45
    $region44: #{tpu_custom_call.1} parent=1 // pred_region
      %s307 = ssub.s32 128, 128
      %308 = vsyncadd [#allocation4], %s307
      %s310 = sshll.u32 [#allocation10], 4
      %s311 = int_to_ptr.vmem [resolvable:$true] %s310
      %313 = dma.vmem_to_hbm [thread:$0]  %s311, 128, %s6, [#allocation4]
    $region45: #{tpu_custom_call.1} parent=1 // pred_fallthru
      _
    // Predicated region
    $region46: #{tpu_custom_call.1} parent=1 // pred_check
      _
    $region47: #{tpu_custom_call.1} parent=1 // pred_check_branch
      %315 = sbr.rel (0) target = $region49
    $region48: #{tpu_custom_call.1} parent=1 // pred_region
      %316 = dma.done [#allocation4], 128
    $region49: #{tpu_custom_call.1} parent=1 // pred_fallthru
      _
    %317 = vsyncpa [#allocation3], 1
    %318 = vsyncpa [#allocation6], 1
    %319 = vsyncpa [#allocation9], 1
    %320 = vsyncpa [#allocation4], 1

</llo_original>
